<compile_context>
chip_gen: v7x
topology: tpu7x:2x2x1
jax: 0.10.0
libtpu: 0.0.40
codegen_flags: <defaults>
</compile_context>

<pallas_src>
import jax
import jax.numpy as jnp
from jax.experimental import pallas as pl
from jax.experimental.pallas import tpu as pltpu


def _round_up(x, m):
    return ((x + m - 1) // m) * m


def _choose_tile_b(batch, tile_b):
    # Cap at 2048 so double-buffered x/out tiles + f32 intermediates fit the
    # default 32 MiB scoped-VMEM limit on v7x (64 MiB physical).
    tile_b = max(8, min(int(tile_b), 2048))
    if batch <= tile_b:
        return batch                        # single grid step (v5e/v6e sweet spot)
    if tile_b >= 256:
        return (tile_b // 256) * 256        # align M to the 256-row MXU
    return _round_up(tile_b, 8)


def actor_kernel(x_ref, w1_ref, b1_ref, w2_ref, b2_ref, w3_ref, aff_ref, o_ref):
    # aff_ref rows: 0 = fc_mu bias, 1 = action_scale, 2 = action_bias (lane-padded)
    aff = aff_ref[...]

    # fc1 + relu  (bf16 MXU inputs, f32 accumulation, f32 elementwise)
    h1 = jnp.dot(x_ref[...], w1_ref[...],
                 preferred_element_type=jnp.float32) + b1_ref[...]
    h1 = jnp.maximum(h1, 0.0)

    # fc2 + relu
    h2 = jnp.dot(h1.astype(jnp.bfloat16), w2_ref[...],
                 preferred_element_type=jnp.float32) + b2_ref[...]
    h2 = jnp.maximum(h2, 0.0)

    # fc_mu + tanh + affine rescale into action range
    mu = jnp.dot(h2.astype(jnp.bfloat16), w3_ref[...],
                 preferred_element_type=jnp.float32) + aff[0:1, :]
    mu = jnp.tanh(mu)
    o_ref[...] = mu * aff[1:2, :] + aff[2:3, :]


def actor_forward(x, w1, b1, w2, b2, w3, b3, action_scale, action_bias,
                  *, tile_b=1024, return_padded=False):
    """x: (B, obs); w_i: (in, out); b_i / scale / bias: (1, out).

    Returns (B, act) f32 (or the lane-dense (B, 128) slab if return_padded)."""
    B, obs = x.shape
    hid = w1.shape[1]
    act = w3.shape[1]
    act_pad = _round_up(act, 128)           # lane-dense output width
    obs_pad = _round_up(obs, 32)            # tile-friendly K for the first matmul

    # --- one-time parameter prep (wrapper side) ----------------------------
    w1p = jnp.zeros((obs_pad, hid), jnp.float32).at[:obs, :].set(w1)
    w1b = w1p.astype(jnp.bfloat16)
    w2b = w2.astype(jnp.bfloat16)
    w3p = jnp.zeros((hid, act_pad), jnp.float32).at[:, :act].set(w3)
    w3b = w3p.astype(jnp.bfloat16)
    b1f = b1.reshape(1, hid).astype(jnp.float32)
    b2f = b2.reshape(1, hid).astype(jnp.float32)
    aff = jnp.zeros((3, act_pad), jnp.float32)
    aff = aff.at[0, :act].set(b3.reshape(-1))
    aff = aff.at[1, :act].set(action_scale.reshape(-1))
    aff = aff.at[2, :act].set(action_bias.reshape(-1))

    # --- x prep: bf16 cast (+ zero-pad obs cols) in ONE fused pass; no batch pad
    x_p = x.astype(jnp.bfloat16)
    if obs_pad != obs:
        x_p = jnp.pad(x_p, ((0, 0), (0, obs_pad - obs)))

    # --- batch tiling -------------------------------------------------------
    tb = _choose_tile_b(B, tile_b)
    grid = (pl.cdiv(B, tb),)                # Pallas masks the partial last block

    resident = lambda i: (0, 0)             # weights stay put across grid steps
    in_specs = [
        pl.BlockSpec((tb, obs_pad), lambda i: (i, 0)),   # x tile streams over B
        pl.BlockSpec((obs_pad, hid), resident),          # w1 (bf16, row-padded)
        pl.BlockSpec((1, hid), resident),                # b1 (f32)
        pl.BlockSpec((hid, hid), resident),              # w2 (bf16)
        pl.BlockSpec((1, hid), resident),                # b2 (f32)
        pl.BlockSpec((hid, act_pad), resident),          # w3 padded (bf16)
        pl.BlockSpec((3, act_pad), resident),            # [b3; scale; bias] (f32)
    ]
    out_spec = pl.BlockSpec((tb, act_pad), lambda i: (i, 0))

    flops = 2 * B * (obs_pad * hid + hid * hid + hid * act_pad)
    bytes_accessed = (x_p.size * 2 + w1b.size * 2 + w2b.size * 2 + w3b.size * 2
                      + b1f.size * 4 + b2f.size * 4 + aff.size * 4
                      + B * act_pad * 4)

    out_padded = pl.pallas_call(
        actor_kernel,
        out_shape=jax.ShapeDtypeStruct((B, act_pad), jnp.float32),
        grid=grid,
        in_specs=in_specs,
        out_specs=out_spec,
        compiler_params=pltpu.CompilerParams(
            dimension_semantics=("parallel",)),
        cost_estimate=pl.CostEstimate(
            flops=flops,
            transcendentals=B * act_pad,
            bytes_accessed=bytes_accessed),
    )(x_p, w1b, b1f, w2b, b2f, w3b, aff)

    if return_padded:
        return out_padded                   # (B, 128): actions in cols [0, act)
    return out_padded[:, :act]


def _init_linear(key, in_dim, out_dim):
    # Deterministic init mimicking torch.nn.Linear default (uniform +- 1/sqrt(in)).
    kw, kb = jax.random.split(key)
    bound = 1.0 / jnp.sqrt(jnp.float32(in_dim))
    w = jax.random.uniform(kw, (in_dim, out_dim), jnp.float32, -bound, bound)
    b = jax.random.uniform(kb, (1, out_dim), jnp.float32, -bound, bound)
    return w, b


if __name__ == "__main__":
    # Small env-like shapes: obs_dim=17, act_dim=6 (MuJoCo-style env), batch 64.
    B, OBS, HID, ACT = 64, 17, 256, 6

    root = jax.random.PRNGKey(0)
    kx, k1, k2, k3 = jax.random.split(root, 4)

    x = jax.random.normal(kx, (B, OBS), jnp.float32)
    w1, b1 = _init_linear(k1, OBS, HID)
    w2, b2 = _init_linear(k2, HID, HID)
    w3, b3 = _init_linear(k3, HID, ACT)

    # action_scale = (high - low)/2, action_bias = (high + low)/2
    action_low = -2.0 * jnp.ones((1, ACT), jnp.float32)
    action_high = 2.0 * jnp.ones((1, ACT), jnp.float32)
    action_scale = (action_high - action_low) / 2.0
    action_bias = (action_high + action_low) / 2.0

    # Pure-JAX f32 reference. Kernel uses bf16 matmul inputs with f32
    # accumulation, so tolerance is relaxed accordingly (post-tanh, scale 2).
    h1 = jnp.maximum(x @ w1 + b1, 0.0)
    h2 = jnp.maximum(h1 @ w2 + b2, 0.0)
    ref = jnp.tanh(h2 @ w3 + b3) * action_scale + action_bias

    # 1) Default tiling: whole batch in a single grid step.
    out = actor_forward(x, w1, b1, w2, b2, w3, b3, action_scale, action_bias)
    out = jax.block_until_ready(out)
    assert out.shape == (B, ACT)
    assert jnp.allclose(out, ref, atol=2e-2, rtol=0.0), (
        float(jnp.max(jnp.abs(out - ref))))

    # 2) Forced multi-step grid with a partial last block (B % tb != 0) to
    #    exercise the no-batch-pad masking path.
    out2 = actor_forward(x, w1, b1, w2, b2, w3, b3, action_scale, action_bias,
                         tile_b=48)
    out2 = jax.block_until_ready(out2)
    assert out2.shape == (B, ACT)
    assert jnp.allclose(out2, ref, atol=2e-2, rtol=0.0), (
        float(jnp.max(jnp.abs(out2 - ref))))

    print("KERNEL_OK")
</pallas_src>

<mosaic_0001>
module attributes {stable_mosaic.version = 11 : i64} {
  func.func @actor_kernel(%arg0: i32, %arg1: memref<64x32xbf16, #tpu.memory_space<vmem>>, %arg2: memref<32x256xbf16, #tpu.memory_space<vmem>>, %arg3: memref<1x256xf32, #tpu.memory_space<vmem>>, %arg4: memref<256x256xbf16, #tpu.memory_space<vmem>>, %arg5: memref<1x256xf32, #tpu.memory_space<vmem>>, %arg6: memref<256x128xbf16, #tpu.memory_space<vmem>>, %arg7: memref<3x128xf32, #tpu.memory_space<vmem>>, %arg8: memref<64x128xf32, #tpu.memory_space<vmem>>) attributes {dimension_semantics = [#tpu.dimension_semantics<parallel>], iteration_bounds = array<i64: 1>, scalar_prefetch = 0 : i64, scratch_operands = 0 : i64, tpu.core_type = #tpu.core_type<tc>, window_params = [{transform_indices = @transform_0, window_bounds = array<i64: 64, 32>}, {pipeline_mode = #tpu.pipeline_mode<synchronous>, transform_indices = @transform_1, window_bounds = array<i64: 32, 256>}, {pipeline_mode = #tpu.pipeline_mode<synchronous>, transform_indices = @transform_2, window_bounds = array<i64: 1, 256>}, {pipeline_mode = #tpu.pipeline_mode<synchronous>, transform_indices = @transform_3, window_bounds = array<i64: 256, 256>}, {pipeline_mode = #tpu.pipeline_mode<synchronous>, transform_indices = @transform_4, window_bounds = array<i64: 1, 256>}, {pipeline_mode = #tpu.pipeline_mode<synchronous>, transform_indices = @transform_5, window_bounds = array<i64: 256, 128>}, {pipeline_mode = #tpu.pipeline_mode<synchronous>, transform_indices = @transform_6, window_bounds = array<i64: 3, 128>}, {transform_indices = @transform_7, window_bounds = array<i64: 64, 128>}]} {
    %c0 = arith.constant 0 : index
    %c0_0 = arith.constant 0 : index
    %0 = vector.load %arg7[%c0, %c0_0] : memref<3x128xf32, #tpu.memory_space<vmem>>, vector<3x128xf32>
    %c0_1 = arith.constant 0 : index
    %c0_2 = arith.constant 0 : index
    %1 = vector.load %arg1[%c0_1, %c0_2] : memref<64x32xbf16, #tpu.memory_space<vmem>>, vector<64x32xbf16>
    %c0_3 = arith.constant 0 : index
    %c0_4 = arith.constant 0 : index
    %2 = vector.load %arg2[%c0_3, %c0_4] : memref<32x256xbf16, #tpu.memory_space<vmem>>, vector<32x256xbf16>
    %cst = arith.constant dense<0.000000e+00> : vector<64x256xf32>
    %3 = tpu.matmul %1, %2, %cst {dimension_numbers = #tpu.dot_dimension_numbers<[1], [0], [0], [1], [0, 0, 1, 1], [], []>} : vector<64x32xbf16>, vector<32x256xbf16>, vector<64x256xf32> -> vector<64x256xf32>
    %c0_5 = arith.constant 0 : index
    %c0_6 = arith.constant 0 : index
    %4 = vector.load %arg3[%c0_5, %c0_6] : memref<1x256xf32, #tpu.memory_space<vmem>>, vector<1x256xf32>
    %5 = vector.broadcast %4 : vector<1x256xf32> to vector<64x256xf32>
    %6 = arith.addf %3, %5 : vector<64x256xf32>
    %cst_7 = arith.constant 0.000000e+00 : f32
    %7 = vector.broadcast %cst_7 : f32 to vector<64x256xf32>
    %8 = arith.maximumf %6, %7 : vector<64x256xf32>
    %9 = arith.truncf %8 : vector<64x256xf32> to vector<64x256xbf16>
    %c0_8 = arith.constant 0 : index
    %c0_9 = arith.constant 0 : index
    %10 = vector.load %arg4[%c0_8, %c0_9] : memref<256x256xbf16, #tpu.memory_space<vmem>>, vector<256x256xbf16>
    %cst_10 = arith.constant dense<0.000000e+00> : vector<64x256xf32>
    %11 = tpu.matmul %9, %10, %cst_10 {dimension_numbers = #tpu.dot_dimension_numbers<[1], [0], [0], [1], [0, 0, 1, 1], [], []>} : vector<64x256xbf16>, vector<256x256xbf16>, vector<64x256xf32> -> vector<64x256xf32>
    %c0_11 = arith.constant 0 : index
    %c0_12 = arith.constant 0 : index
    %12 = vector.load %arg5[%c0_11, %c0_12] : memref<1x256xf32, #tpu.memory_space<vmem>>, vector<1x256xf32>
    %13 = vector.broadcast %12 : vector<1x256xf32> to vector<64x256xf32>
    %14 = arith.addf %11, %13 : vector<64x256xf32>
    %cst_13 = arith.constant 0.000000e+00 : f32
    %15 = vector.broadcast %cst_13 : f32 to vector<64x256xf32>
    %16 = arith.maximumf %14, %15 : vector<64x256xf32>
    %17 = arith.truncf %16 : vector<64x256xf32> to vector<64x256xbf16>
    %c0_14 = arith.constant 0 : index
    %c0_15 = arith.constant 0 : index
    %18 = vector.load %arg6[%c0_14, %c0_15] : memref<256x128xbf16, #tpu.memory_space<vmem>>, vector<256x128xbf16>
    %cst_16 = arith.constant dense<0.000000e+00> : vector<64x128xf32>
    %19 = tpu.matmul %17, %18, %cst_16 {dimension_numbers = #tpu.dot_dimension_numbers<[1], [0], [0], [1], [0, 0, 1, 1], [], []>} : vector<64x256xbf16>, vector<256x128xbf16>, vector<64x128xf32> -> vector<64x128xf32>
    %20 = vector.extract_strided_slice %0 {offsets = [0, 0], sizes = [1, 128], strides = [1, 1]} : vector<3x128xf32> to vector<1x128xf32>
    %21 = vector.broadcast %20 : vector<1x128xf32> to vector<64x128xf32>
    %22 = arith.addf %19, %21 : vector<64x128xf32>
    %23 = math.tanh %22 : vector<64x128xf32>
    %24 = vector.extract_strided_slice %0 {offsets = [1, 0], sizes = [1, 128], strides = [1, 1]} : vector<3x128xf32> to vector<1x128xf32>
    %25 = vector.broadcast %24 : vector<1x128xf32> to vector<64x128xf32>
    %26 = arith.mulf %23, %25 : vector<64x128xf32>
    %27 = vector.extract_strided_slice %0 {offsets = [2, 0], sizes = [1, 128], strides = [1, 1]} : vector<3x128xf32> to vector<1x128xf32>
    %28 = vector.broadcast %27 : vector<1x128xf32> to vector<64x128xf32>
    %29 = arith.addf %26, %28 : vector<64x128xf32>
    %c0_17 = arith.constant 0 : index
    %c0_18 = arith.constant 0 : index
    %30 = vector.load %arg8[%c0_17, %c0_18] : memref<64x128xf32, #tpu.memory_space<vmem>>, vector<64x128xf32>
    tpu.vector_store %arg8[%c0_17, %c0_18], %29 {strides = array<i32>} : memref<64x128xf32, #tpu.memory_space<vmem>>, vector<64x128xf32>,
    return
  }
  func.func @transform_0(%arg0: i32) -> (i32, i32) {
    %c0_i32 = arith.constant 0 : i32
    %c0_i32_0 = arith.constant 0 : i32
    return %arg0, %c0_i32 : i32, i32
  }
  func.func @transform_1(%arg0: i32) -> (i32, i32) {
    %c0_i32 = arith.constant 0 : i32
    %c0_i32_0 = arith.constant 0 : i32
    %c0_i32_1 = arith.constant 0 : i32
    return %c0_i32, %c0_i32_0 : i32, i32
  }
  func.func @transform_2(%arg0: i32) -> (i32, i32) {
    %c0_i32 = arith.constant 0 : i32
    %c0_i32_0 = arith.constant 0 : i32
    %c0_i32_1 = arith.constant 0 : i32
    return %c0_i32, %c0_i32_0 : i32, i32
  }
  func.func @transform_3(%arg0: i32) -> (i32, i32) {
    %c0_i32 = arith.constant 0 : i32
    %c0_i32_0 = arith.constant 0 : i32
    %c0_i32_1 = arith.constant 0 : i32
    return %c0_i32, %c0_i32_0 : i32, i32
  }
  func.func @transform_4(%arg0: i32) -> (i32, i32) {
    %c0_i32 = arith.constant 0 : i32
    %c0_i32_0 = arith.constant 0 : i32
    %c0_i32_1 = arith.constant 0 : i32
    return %c0_i32, %c0_i32_0 : i32, i32
  }
  func.func @transform_5(%arg0: i32) -> (i32, i32) {
    %c0_i32 = arith.constant 0 : i32
    %c0_i32_0 = arith.constant 0 : i32
    %c0_i32_1 = arith.constant 0 : i32
    return %c0_i32, %c0_i32_0 : i32, i32
  }
  func.func @transform_6(%arg0: i32) -> (i32, i32) {
    %c0_i32 = arith.constant 0 : i32
    %c0_i32_0 = arith.constant 0 : i32
    %c0_i32_1 = arith.constant 0 : i32
    return %c0_i32, %c0_i32_0 : i32, i32
  }
  func.func @transform_7(%arg0: i32) -> (i32, i32) {
    %c0_i32 = arith.constant 0 : i32
    %c0_i32_0 = arith.constant 0 : i32
    return %arg0, %c0_i32 : i32, i32
  }
}

</mosaic_0001>

<llo_original>
// kernel: tpu_custom_call.1
$region0: #{tpu_custom_call.1}
  #allocation0 [shape = 'u32[]', space=smem, size = 0x4, offset = 0x4, fixed_abs, tag = 'smem constant byte address 0x4 - core index']
  #allocation1 [shape = 'u32[144,128]{1,0:T(1,128)}', space=vmem, size = 0x12000, scoped, tag = 'internal scratch']
  %s0 = inlined_call_operand.vmem [shape: bf16[64,32], index: 0, kind: input, shape index: {}]
  %s1 = inlined_call_operand.vmem [shape: bf16[32,256], index: 1, kind: input, shape index: {}]
  %s2 = inlined_call_operand.vmem [shape: f32[1,256], index: 2, kind: input, shape index: {}]
  %s3 = inlined_call_operand.hbm [shape: bf16[256,256], index: 3, kind: input, shape index: {}]
  %s4 = inlined_call_operand.vmem [shape: f32[1,256], index: 4, kind: input, shape index: {}]
  %s5 = inlined_call_operand.hbm [shape: bf16[256,128], index: 5, kind: input, shape index: {}]
  %s6 = inlined_call_operand.vmem [shape: f32[3,128], index: 6, kind: input, shape index: {}]
  %s7 = inlined_call_operand.hbm [shape: f32[64,128], index: 7, kind: output, shape index: {}]
  %s8 = sld [smem:[#allocation0]]
  $region46: #{tpu_custom_call.1} parent=0
    _
  %s10 = ssub.s32 1, %s8
  %s11 = scalar_select 0, %s10, %s8
  $region1: #{tpu_custom_call.1} parent=0
    #allocation2 [shape = 'u8[131072]{0}', space=vmem, size = 0x20000, scoped, tag = 'input window, operand 3, single buffered']
    #allocation3 [shape = 's32[1]{0}', space=sflag, size = 0x4, scoped, tag = 'scoped memory for tpu_custom_call.1']
    #allocation4 [shape = 's32[1]{0}', space=sflag, size = 0x4, scoped, tag = 'scoped memory for tpu_custom_call.1']
    #allocation5 [shape = 'u8[65536]{0}', space=vmem, size = 0x10000, scoped, tag = 'input window, operand 5, single buffered']
    #allocation6 [shape = 's32[1]{0}', space=sflag, size = 0x4, scoped, tag = 'scoped memory for tpu_custom_call.1']
    #allocation7 [shape = 'u8[32768]{0}', space=vmem, size = 0x8000, scoped, tag = 'output window, operand 0, single buffered']
    %12 = vsyncpa [#allocation3], 0
    %13 = vsyncpa [#allocation6], 0
    %14 = vsyncpa [#allocation4], 0
    // Predicated region
    $region2: #{tpu_custom_call.1} parent=1 // pred_check
      _
    $region3: #{tpu_custom_call.1} parent=1 // pred_check_branch
      %16 = sbr.rel (0) target = $region5
    $region4: #{tpu_custom_call.1} parent=1 // pred_region
      _
    $region5: #{tpu_custom_call.1} parent=1 // pred_fallthru
      _
    // Predicated region
    $region6: #{tpu_custom_call.1} parent=1 // pred_check
      _
    $region7: #{tpu_custom_call.1} parent=1 // pred_check_branch
      %18 = sbr.rel (0) target = $region9
    $region8: #{tpu_custom_call.1} parent=1 // pred_region
      _
    $region9: #{tpu_custom_call.1} parent=1 // pred_fallthru
      _
    // Predicated region
    $region10: #{tpu_custom_call.1} parent=1 // pred_check
      _
    $region11: #{tpu_custom_call.1} parent=1 // pred_check_branch
      %20 = sbr.rel (0) target = $region13
    $region12: #{tpu_custom_call.1} parent=1 // pred_region
      _
    $region13: #{tpu_custom_call.1} parent=1 // pred_fallthru
      _
    // Predicated region
    $region14: #{tpu_custom_call.1} parent=1 // pred_check
      _
    $region15: #{tpu_custom_call.1} parent=1 // pred_check_branch
      %22 = sbr.rel (0) target = $region17
    $region16: #{tpu_custom_call.1} parent=1 // pred_region
      %s24 = ssub.s32 4096, 4096
      %25 = vsyncadd [#allocation3], %s24
      %s26 = sshll.u32 [#allocation2], 4
      %s27 = int_to_ptr.vmem [resolvable:$true] %s26
      %32 = dma.hbm_to_vmem [thread:$0]  %s3, 4096, %s27, [#allocation3], 128, 128, 8
    $region17: #{tpu_custom_call.1} parent=1 // pred_fallthru
      _
    // Predicated region
    $region18: #{tpu_custom_call.1} parent=1 // pred_check
      _
    $region19: #{tpu_custom_call.1} parent=1 // pred_check_branch
      %34 = sbr.rel (0) target = $region21
    $region20: #{tpu_custom_call.1} parent=1 // pred_region
      _
    $region21: #{tpu_custom_call.1} parent=1 // pred_fallthru
      _
    // Predicated region
    $region22: #{tpu_custom_call.1} parent=1 // pred_check
      _
    $region23: #{tpu_custom_call.1} parent=1 // pred_check_branch
      %36 = sbr.rel (0) target = $region25
    $region24: #{tpu_custom_call.1} parent=1 // pred_region
      %s38 = ssub.s32 2048, 2048
      %39 = vsyncadd [#allocation6], %s38
      %s40 = sshll.u32 [#allocation5], 4
      %s41 = int_to_ptr.vmem [resolvable:$true] %s40
      %46 = dma.hbm_to_vmem [thread:$0]  %s5, 2048, %s41, [#allocation6], 64, 64, 4
    $region25: #{tpu_custom_call.1} parent=1 // pred_fallthru
      _
    // Predicated region
    $region26: #{tpu_custom_call.1} parent=1 // pred_check
      _
    $region27: #{tpu_custom_call.1} parent=1 // pred_check_branch
      %48 = sbr.rel (0) target = $region29
    $region28: #{tpu_custom_call.1} parent=1 // pred_region
      _
    $region29: #{tpu_custom_call.1} parent=1 // pred_fallthru
      _
    // Predicated region
    $region30: #{tpu_custom_call.1} parent=1 // pred_check
      _
    $region31: #{tpu_custom_call.1} parent=1 // pred_check_branch
      %50 = sbr.rel (0) target = $region33
    $region32: #{tpu_custom_call.1} parent=1 // pred_region
      %51 = dma.done [#allocation3], 4096
    $region33: #{tpu_custom_call.1} parent=1 // pred_fallthru
      _
    // Predicated region
    $region34: #{tpu_custom_call.1} parent=1 // pred_check
      _
    $region35: #{tpu_custom_call.1} parent=1 // pred_check_branch
      %53 = sbr.rel (0) target = $region37
    $region36: #{tpu_custom_call.1} parent=1 // pred_region
      %54 = dma.done [#allocation6], 2048
    $region37: #{tpu_custom_call.1} parent=1 // pred_fallthru
      _
    %v56 = vld [vmem:[%s6] sm:$0x7]
    %v57 = vld [vmem:[%s0] sm:$0xf]
    %v58 = vld [vmem:[%s0 + $0x4] sm:$0xf]
    %v59 = vld [vmem:[%s0 + $0x8] sm:$0xf]
    %v60 = vld [vmem:[%s0 + $0xc] sm:$0xf]
    %v61 = vld [vmem:[%s0 + $0x10] sm:$0xf]
    %v62 = vld [vmem:[%s0 + $0x14] sm:$0xf]
    %v63 = vld [vmem:[%s0 + $0x18] sm:$0xf]
    %v64 = vld [vmem:[%s0 + $0x1c] sm:$0xf]
    %v65 = vld [vmem:[%s1] sm:$0xff]
    %v66 = vld [vmem:[%s1 + $0x8] sm:$0xff]
    %v67 = vld [vmem:[%s1 + $0x10] sm:$0xff]
    %v68 = vld [vmem:[%s1 + $0x18] sm:$0xff]
    %v69 = vld [vmem:[%s2] sm:$0x3]
    %v71 = vlaneseq
    %v72 = vshrl.u32 %v71, 7
    %v73 = vsub.s32 0, %v72
    %v74 = vrot.slane %v69, %v73
    %v75 = vlaneseq
    %v76 = vshrl.u32 %v75, 7
    %v77 = vsub.s32 1, %v76
    %v78 = vrot.slane %v69, %v77
    %v89 = vunpack.c.l.b16 %v57
    %v90 = vunpack.c.l.b16 %v58
    %v91 = vunpack.c.l.b16 %v59
    %v92 = vunpack.c.l.b16 %v60
    %v93 = vunpack.c.l.b16 %v61
    %v94 = vunpack.c.l.b16 %v62
    %v95 = vunpack.c.l.b16 %v63
    %v96 = vunpack.c.l.b16 %v64
    %v97 = vpack.c.b16 %v90, %v89
    %v98 = vpack.c.b16 %v92, %v91
    %v99 = vpack.c.b16 %v94, %v93
    %v100 = vpack.c.b16 %v96, %v95
    %v105 = vunpack.c.l.b16 %v65
    %v106 = vunpack.c.h.b16 %v65
    %v107 = vunpack.c.l.b16 %v66
    %v108 = vunpack.c.h.b16 %v66
    %v109 = vunpack.c.l.b16 %v67
    %v110 = vunpack.c.h.b16 %v67
    %v111 = vunpack.c.l.b16 %v68
    %v112 = vunpack.c.h.b16 %v68
    %v113 = vpack.c.b16 %v107, %v105
    %v114 = vpack.c.b16 %v108, %v106
    %v115 = vpack.c.b16 %v111, %v109
    %v116 = vpack.c.b16 %v112, %v110
    %vm121 = vcmask 261120
    %v123 = vsel %vm121, %v97, 0
    %v126 = vsel %vm121, %v98, 0
    %v129 = vsel %vm121, %v99, 0
    %v132 = vsel %vm121, %v100, 0
    %134 = vmatprep.subr.bf16.mxu0 %v114
    %135 = vmatpush1.bf16.msra.mxu0 %v113
    %136 = vmatprep.subr.bf16.mxu0 %v116
    %137 = vmatpush1.bf16.msra.mxu0 %v115
    %138 = vmatprep.subr.bf16.mxu0 0
    %139 = vmatpush1.bf16.msra.mxu0 0
    %140 = vmatprep.subr.bf16.mxu0 0
    %141 = vmatpush1.bf16.msra.mxu0 0
    %142 = vmatprep.subr.bf16.mxu0 0
    %143 = vmatpush1.bf16.msra.mxu0 0
    %144 = vmatprep.subr.bf16.mxu0 0
    %145 = vmatpush1.bf16.msra.mxu0 0
    %146 = vmatprep.subr.bf16.mxu0 0
    %147 = vmatpush1.bf16.msra.mxu0 0
    %148 = vmatprep.subr.bf16.mxu0 0
    %149 = vmatpush1.bf16.msra.mxu0 0
    %150 = vmatprep.subr.bf16.mxu0 0
    %151 = vmatpush1.bf16.msra.mxu0 0
    %152 = vmatprep.subr.bf16.mxu0 0
    %153 = vmatpush1.bf16.msra.mxu0 0
    %154 = vmatprep.subr.bf16.mxu0 0
    %155 = vmatpush1.bf16.msra.mxu0 0
    %156 = vmatprep.subr.bf16.mxu0 0
    %157 = vmatpush1.bf16.msra.mxu0 0
    %158 = vmatprep.subr.bf16.mxu0 0
    %159 = vmatpush1.bf16.msra.mxu0 0
    %160 = vmatprep.subr.bf16.mxu0 0
    %161 = vmatpush1.bf16.msra.mxu0 0
    %162 = vmatprep.subr.bf16.mxu0 0
    %163 = vmatpush1.bf16.msra.mxu0 0
    %164 = vmatprep.subr.bf16.mxu0 0
    %165 = vmatpush1.bf16.msra.mxu0 0
    %166 = vmatprep.mubr.bf16.mxu0 0
    %167 = vmatmul.mubr.bf16.gmra.mrb[0].mxu0 %v123
    %v168 = vpop.f32.mrb[0].mxu0
    %v169 = vadd.f32 %v74, %v168
    %v170 = vpop.f32.mrb[0].mxu0
    %v171 = vadd.f32 %v78, %v170
    %v172 = vpop.f32.mrb[0].mxu0
    %v173 = vadd.f32 %v74, %v172
    %v174 = vpop.f32.mrb[0].mxu0
    %v175 = vadd.f32 %v78, %v174
    %176 = vmatprep.mubr.bf16.mxu0 0
    %177 = vmatmul.mubr.bf16.gmra.mrb[0].mxu0 %v126
    %v178 = vpop.f32.mrb[0].mxu0
    %v179 = vadd.f32 %v74, %v178
    %v180 = vpop.f32.mrb[0].mxu0
    %v181 = vadd.f32 %v78, %v180
    %v182 = vpop.f32.mrb[0].mxu0
    %v183 = vadd.f32 %v74, %v182
    %v184 = vpop.f32.mrb[0].mxu0
    %v185 = vadd.f32 %v78, %v184
    %186 = vmatprep.mubr.bf16.mxu0 0
    %187 = vmatmul.mubr.bf16.gmra.mrb[0].mxu0 %v129
    %v188 = vpop.f32.mrb[0].mxu0
    %v189 = vadd.f32 %v74, %v188
    %v190 = vpop.f32.mrb[0].mxu0
    %v191 = vadd.f32 %v78, %v190
    %v192 = vpop.f32.mrb[0].mxu0
    %v193 = vadd.f32 %v74, %v192
    %v194 = vpop.f32.mrb[0].mxu0
    %v195 = vadd.f32 %v78, %v194
    %196 = vmatprep.mubr.bf16.mxu0 0
    %197 = vmatmul.mubr.bf16.gmra.mrb[0].mxu0 %v132
    %v198 = vpop.f32.mrb[0].mxu0
    %v199 = vadd.f32 %v74, %v198
    %v200 = vpop.f32.mrb[0].mxu0
    %v201 = vadd.f32 %v78, %v200
    %v202 = vpop.f32.mrb[0].mxu0
    %v203 = vadd.f32 %v74, %v202
    %v204 = vpop.f32.mrb[0].mxu0
    %v205 = vadd.f32 %v78, %v204
    %206 = vdwg.mxu0
    %v207 = vmax.f32 %v169, 0.0
    %v208 = vmax.f32 %v171, 0.0
    %v209 = vmax.f32 %v173, 0.0
    %v210 = vmax.f32 %v175, 0.0
    %v211 = vmax.f32 %v179, 0.0
    %v212 = vmax.f32 %v181, 0.0
    %v213 = vmax.f32 %v183, 0.0
    %v214 = vmax.f32 %v185, 0.0
    %v215 = vmax.f32 %v189, 0.0
    %v216 = vmax.f32 %v191, 0.0
    %v217 = vmax.f32 %v193, 0.0
    %v218 = vmax.f32 %v195, 0.0
    %v219 = vmax.f32 %v199, 0.0
    %v220 = vmax.f32 %v201, 0.0
    %v221 = vmax.f32 %v203, 0.0
    %v222 = vmax.f32 %v205, 0.0
    %v223 = vpack.c.bf16 %v209, %v207
    %v224 = vpack.c.bf16 %v210, %v208
    %v225 = vpack.c.bf16 %v213, %v211
    %v226 = vpack.c.bf16 %v214, %v212
    %v227 = vpack.c.bf16 %v217, %v215
    %v228 = vpack.c.bf16 %v218, %v216
    %v229 = vpack.c.bf16 %v221, %v219
    %v230 = vpack.c.bf16 %v222, %v220
    %v231 = vld [vmem:[#allocation2] sm:$0xff]
    %v232 = vld [vmem:[#allocation2 + $0x8] sm:$0xff]
    %v233 = vld [vmem:[#allocation2 + $0x10] sm:$0xff]
    %v234 = vld [vmem:[#allocation2 + $0x18] sm:$0xff]
    %v235 = vld [vmem:[#allocation2 + $0x20] sm:$0xff]
    %v236 = vld [vmem:[#allocation2 + $0x28] sm:$0xff]
    %v237 = vld [vmem:[#allocation2 + $0x30] sm:$0xff]
    %v238 = vld [vmem:[#allocation2 + $0x38] sm:$0xff]
    %v239 = vld [vmem:[#allocation2 + $0x40] sm:$0xff]
    %v240 = vld [vmem:[#allocation2 + $0x48] sm:$0xff]
    %v241 = vld [vmem:[#allocation2 + $0x50] sm:$0xff]
    %v242 = vld [vmem:[#allocation2 + $0x58] sm:$0xff]
    %v243 = vld [vmem:[#allocation2 + $0x60] sm:$0xff]
    %v244 = vld [vmem:[#allocation2 + $0x68] sm:$0xff]
    %v245 = vld [vmem:[#allocation2 + $0x70] sm:$0xff]
    %v246 = vld [vmem:[#allocation2 + $0x78] sm:$0xff]
    %v247 = vld [vmem:[#allocation2 + $0x80] sm:$0xff]
    %v248 = vld [vmem:[#allocation2 + $0x88] sm:$0xff]
    %v249 = vld [vmem:[#allocation2 + $0x90] sm:$0xff]
    %v250 = vld [vmem:[#allocation2 + $0x98] sm:$0xff]
    %v251 = vld [vmem:[#allocation2 + $0xa0] sm:$0xff]
    %v252 = vld [vmem:[#allocation2 + $0xa8] sm:$0xff]
    %v253 = vld [vmem:[#allocation2 + $0xb0] sm:$0xff]
    %v254 = vld [vmem:[#allocation2 + $0xb8] sm:$0xff]
    %v255 = vld [vmem:[#allocation2 + $0xc0] sm:$0xff]
    %v256 = vld [vmem:[#allocation2 + $0xc8] sm:$0xff]
    %v257 = vld [vmem:[#allocation2 + $0xd0] sm:$0xff]
    %v258 = vld [vmem:[#allocation2 + $0xd8] sm:$0xff]
    %v259 = vld [vmem:[#allocation2 + $0xe0] sm:$0xff]
    %v260 = vld [vmem:[#allocation2 + $0xe8] sm:$0xff]
    %v261 = vld [vmem:[#allocation2 + $0xf0] sm:$0xff]
    %v262 = vld [vmem:[#allocation2 + $0xf8] sm:$0xff]
    %v263 = vld [vmem:[%s4] sm:$0x3]
    %v265 = vlaneseq
    %v266 = vshrl.u32 %v265, 7
    %v267 = vsub.s32 0, %v266
    %v268 = vrot.slane %v263, %v267
    %v269 = vlaneseq
    %v270 = vshrl.u32 %v269, 7
    %v271 = vsub.s32 1, %v270
    %v272 = vrot.slane %v263, %v271
    %v307 = vunpack.c.l.b16 %v231
    %v308 = vunpack.c.h.b16 %v231
    %v309 = vunpack.c.l.b16 %v232
    %v310 = vunpack.c.h.b16 %v232
    %v311 = vunpack.c.l.b16 %v233
    %v312 = vunpack.c.h.b16 %v233
    %v313 = vunpack.c.l.b16 %v234
    %v314 = vunpack.c.h.b16 %v234
    %v315 = vunpack.c.l.b16 %v235
    %v316 = vunpack.c.h.b16 %v235
    %v317 = vunpack.c.l.b16 %v236
    %v318 = vunpack.c.h.b16 %v236
    %v319 = vunpack.c.l.b16 %v237
    %v320 = vunpack.c.h.b16 %v237
    %v321 = vunpack.c.l.b16 %v238
    %v322 = vunpack.c.h.b16 %v238
    %v323 = vunpack.c.l.b16 %v239
    %v324 = vunpack.c.h.b16 %v239
    %v325 = vunpack.c.l.b16 %v240
    %v326 = vunpack.c.h.b16 %v240
    %v327 = vunpack.c.l.b16 %v241
    %v328 = vunpack.c.h.b16 %v241
    %v329 = vunpack.c.l.b16 %v242
    %v330 = vunpack.c.h.b16 %v242
    %v331 = vunpack.c.l.b16 %v243
    %v332 = vunpack.c.h.b16 %v243
    %v333 = vunpack.c.l.b16 %v244
    %v334 = vunpack.c.h.b16 %v244
    %v335 = vunpack.c.l.b16 %v245
    %v336 = vunpack.c.h.b16 %v245
    %v337 = vunpack.c.l.b16 %v246
    %v338 = vunpack.c.h.b16 %v246
    %v339 = vunpack.c.l.b16 %v247
    %v340 = vunpack.c.h.b16 %v247
    %v341 = vunpack.c.l.b16 %v248
    %v342 = vunpack.c.h.b16 %v248
    %v343 = vunpack.c.l.b16 %v249
    %v344 = vunpack.c.h.b16 %v249
    %v345 = vunpack.c.l.b16 %v250
    %v346 = vunpack.c.h.b16 %v250
    %v347 = vunpack.c.l.b16 %v251
    %v348 = vunpack.c.h.b16 %v251
    %v349 = vunpack.c.l.b16 %v252
    %v350 = vunpack.c.h.b16 %v252
    %v351 = vunpack.c.l.b16 %v253
    %v352 = vunpack.c.h.b16 %v253
    %v353 = vunpack.c.l.b16 %v254
    %v354 = vunpack.c.h.b16 %v254
    %v355 = vunpack.c.l.b16 %v255
    %v356 = vunpack.c.h.b16 %v255
    %v357 = vunpack.c.l.b16 %v256
    %v358 = vunpack.c.h.b16 %v256
    %v359 = vunpack.c.l.b16 %v257
    %v360 = vunpack.c.h.b16 %v257
    %v361 = vunpack.c.l.b16 %v258
    %v362 = vunpack.c.h.b16 %v258
    %v363 = vunpack.c.l.b16 %v259
    %v364 = vunpack.c.h.b16 %v259
    %v365 = vunpack.c.l.b16 %v260
    %v366 = vunpack.c.h.b16 %v260
    %v367 = vunpack.c.l.b16 %v261
    %v368 = vunpack.c.h.b16 %v261
    %v369 = vunpack.c.l.b16 %v262
    %v370 = vunpack.c.h.b16 %v262
    %v371 = vpack.c.b16 %v309, %v307
    %v372 = vpack.c.b16 %v310, %v308
    %v373 = vpack.c.b16 %v313, %v311
    %v374 = vpack.c.b16 %v314, %v312
    %v375 = vpack.c.b16 %v317, %v315
    %v376 = vpack.c.b16 %v318, %v316
    %v377 = vpack.c.b16 %v321, %v319
    %v378 = vpack.c.b16 %v322, %v320
    %v379 = vpack.c.b16 %v325, %v323
    %v380 = vpack.c.b16 %v326, %v324
    %v381 = vpack.c.b16 %v329, %v327
    %v382 = vpack.c.b16 %v330, %v328
    %v383 = vpack.c.b16 %v333, %v331
    %v384 = vpack.c.b16 %v334, %v332
    %v385 = vpack.c.b16 %v337, %v335
    %v386 = vpack.c.b16 %v338, %v336
    %v387 = vpack.c.b16 %v341, %v339
    %v388 = vpack.c.b16 %v342, %v340
    %v389 = vpack.c.b16 %v345, %v343
    %v390 = vpack.c.b16 %v346, %v344
    %v391 = vpack.c.b16 %v349, %v347
    %v392 = vpack.c.b16 %v350, %v348
    %v393 = vpack.c.b16 %v353, %v351
    %v394 = vpack.c.b16 %v354, %v352
    %v395 = vpack.c.b16 %v357, %v355
    %v396 = vpack.c.b16 %v358, %v356
    %v397 = vpack.c.b16 %v361, %v359
    %v398 = vpack.c.b16 %v362, %v360
    %v399 = vpack.c.b16 %v365, %v363
    %v400 = vpack.c.b16 %v366, %v364
    %v401 = vpack.c.b16 %v369, %v367
    %v402 = vpack.c.b16 %v370, %v368
    %435 = vmatprep.subr.bf16.mxu0 %v372
    %436 = vmatpush1.bf16.msra.mxu0 %v371
    %437 = vmatprep.subr.bf16.mxu0 %v374
    %438 = vmatpush1.bf16.msra.mxu0 %v373
    %439 = vmatprep.subr.bf16.mxu0 %v376
    %440 = vmatpush1.bf16.msra.mxu0 %v375
    %441 = vmatprep.subr.bf16.mxu0 %v378
    %442 = vmatpush1.bf16.msra.mxu0 %v377
    %443 = vmatprep.subr.bf16.mxu0 %v380
    %444 = vmatpush1.bf16.msra.mxu0 %v379
    %445 = vmatprep.subr.bf16.mxu0 %v382
    %446 = vmatpush1.bf16.msra.mxu0 %v381
    %447 = vmatprep.subr.bf16.mxu0 %v384
    %448 = vmatpush1.bf16.msra.mxu0 %v383
    %449 = vmatprep.subr.bf16.mxu0 %v386
    %450 = vmatpush1.bf16.msra.mxu0 %v385
    %451 = vmatprep.subr.bf16.mxu0 %v388
    %452 = vmatpush1.bf16.msra.mxu0 %v387
    %453 = vmatprep.subr.bf16.mxu0 %v390
    %454 = vmatpush1.bf16.msra.mxu0 %v389
    %455 = vmatprep.subr.bf16.mxu0 %v392
    %456 = vmatpush1.bf16.msra.mxu0 %v391
    %457 = vmatprep.subr.bf16.mxu0 %v394
    %458 = vmatpush1.bf16.msra.mxu0 %v393
    %459 = vmatprep.subr.bf16.mxu0 %v396
    %460 = vmatpush1.bf16.msra.mxu0 %v395
    %461 = vmatprep.subr.bf16.mxu0 %v398
    %462 = vmatpush1.bf16.msra.mxu0 %v397
    %463 = vmatprep.subr.bf16.mxu0 %v400
    %464 = vmatpush1.bf16.msra.mxu0 %v399
    %465 = vmatprep.subr.bf16.mxu0 %v402
    %466 = vmatpush1.bf16.msra.mxu0 %v401
    %467 = vmatprep.mubr.bf16.mxu0 %v224
    %468 = vmatmul.mubr.bf16.gmra.mrb[0].mxu0 %v223
    %v469 = vpop.f32.mrb[0].mxu0
    %v470 = vadd.f32 %v268, %v469
    %v471 = vpop.f32.mrb[0].mxu0
    %v472 = vadd.f32 %v272, %v471
    %v473 = vpop.f32.mrb[0].mxu0
    %v474 = vadd.f32 %v268, %v473
    %v475 = vpop.f32.mrb[0].mxu0
    %v476 = vadd.f32 %v272, %v475
    %477 = vmatprep.mubr.bf16.mxu0 %v226
    %478 = vmatmul.mubr.bf16.gmra.mrb[0].mxu0 %v225
    %v479 = vpop.f32.mrb[0].mxu0
    %v480 = vadd.f32 %v268, %v479
    %v481 = vpop.f32.mrb[0].mxu0
    %v482 = vadd.f32 %v272, %v481
    %v483 = vpop.f32.mrb[0].mxu0
    %v484 = vadd.f32 %v268, %v483
    %v485 = vpop.f32.mrb[0].mxu0
    %v486 = vadd.f32 %v272, %v485
    %487 = vmatprep.mubr.bf16.mxu0 %v228
    %488 = vmatmul.mubr.bf16.gmra.mrb[0].mxu0 %v227
    %v489 = vpop.f32.mrb[0].mxu0
    %v490 = vadd.f32 %v268, %v489
    %v491 = vpop.f32.mrb[0].mxu0
    %v492 = vadd.f32 %v272, %v491
    %v493 = vpop.f32.mrb[0].mxu0
    %v494 = vadd.f32 %v268, %v493
    %v495 = vpop.f32.mrb[0].mxu0
    %v496 = vadd.f32 %v272, %v495
    %497 = vmatprep.mubr.bf16.mxu0 %v230
    %498 = vmatmul.mubr.bf16.gmra.mrb[0].mxu0 %v229
    %v499 = vpop.f32.mrb[0].mxu0
    %v500 = vadd.f32 %v268, %v499
    %v501 = vpop.f32.mrb[0].mxu0
    %v502 = vadd.f32 %v272, %v501
    %v503 = vpop.f32.mrb[0].mxu0
    %v504 = vadd.f32 %v268, %v503
    %v505 = vpop.f32.mrb[0].mxu0
    %v506 = vadd.f32 %v272, %v505
    %507 = vdwg.mxu0
    %v508 = vmax.f32 %v470, 0.0
    %v509 = vmax.f32 %v472, 0.0
    %v510 = vmax.f32 %v474, 0.0
    %v511 = vmax.f32 %v476, 0.0
    %v512 = vmax.f32 %v480, 0.0
    %v513 = vmax.f32 %v482, 0.0
    %v514 = vmax.f32 %v484, 0.0
    %v515 = vmax.f32 %v486, 0.0
    %v516 = vmax.f32 %v490, 0.0
    %v517 = vmax.f32 %v492, 0.0
    %v518 = vmax.f32 %v494, 0.0
    %v519 = vmax.f32 %v496, 0.0
    %v520 = vmax.f32 %v500, 0.0
    %v521 = vmax.f32 %v502, 0.0
    %v522 = vmax.f32 %v504, 0.0
    %v523 = vmax.f32 %v506, 0.0
    %v524 = vpack.c.bf16 %v510, %v508
    %v525 = vpack.c.bf16 %v511, %v509
    %v526 = vpack.c.bf16 %v514, %v512
    %v527 = vpack.c.bf16 %v515, %v513
    %v528 = vpack.c.bf16 %v518, %v516
    %v529 = vpack.c.bf16 %v519, %v517
    %v530 = vpack.c.bf16 %v522, %v520
    %v531 = vpack.c.bf16 %v523, %v521
    %v532 = vld [vmem:[#allocation5] sm:$0xf]
    %v533 = vld [vmem:[#allocation5 + $0x4] sm:$0xf]
    %v534 = vld [vmem:[#allocation5 + $0x8] sm:$0xf]
    %v535 = vld [vmem:[#allocation5 + $0xc] sm:$0xf]
    %v536 = vld [vmem:[#allocation5 + $0x10] sm:$0xf]
    %v537 = vld [vmem:[#allocation5 + $0x14] sm:$0xf]
    %v538 = vld [vmem:[#allocation5 + $0x18] sm:$0xf]
    %v539 = vld [vmem:[#allocation5 + $0x1c] sm:$0xf]
    %v540 = vld [vmem:[#allocation5 + $0x20] sm:$0xf]
    %v541 = vld [vmem:[#allocation5 + $0x24] sm:$0xf]
    %v542 = vld [vmem:[#allocation5 + $0x28] sm:$0xf]
    %v543 = vld [vmem:[#allocation5 + $0x2c] sm:$0xf]
    %v544 = vld [vmem:[#allocation5 + $0x30] sm:$0xf]
    %v545 = vld [vmem:[#allocation5 + $0x34] sm:$0xf]
    %v546 = vld [vmem:[#allocation5 + $0x38] sm:$0xf]
    %v547 = vld [vmem:[#allocation5 + $0x3c] sm:$0xf]
    %v548 = vld [vmem:[#allocation5 + $0x40] sm:$0xf]
    %v549 = vld [vmem:[#allocation5 + $0x44] sm:$0xf]
    %v550 = vld [vmem:[#allocation5 + $0x48] sm:$0xf]
    %v551 = vld [vmem:[#allocation5 + $0x4c] sm:$0xf]
    %v552 = vld [vmem:[#allocation5 + $0x50] sm:$0xf]
    %v553 = vld [vmem:[#allocation5 + $0x54] sm:$0xf]
    %v554 = vld [vmem:[#allocation5 + $0x58] sm:$0xf]
    %v555 = vld [vmem:[#allocation5 + $0x5c] sm:$0xf]
    %v556 = vld [vmem:[#allocation5 + $0x60] sm:$0xf]
    %v557 = vld [vmem:[#allocation5 + $0x64] sm:$0xf]
    %v558 = vld [vmem:[#allocation5 + $0x68] sm:$0xf]
    %v559 = vld [vmem:[#allocation5 + $0x6c] sm:$0xf]
    %v560 = vld [vmem:[#allocation5 + $0x70] sm:$0xf]
    %v561 = vld [vmem:[#allocation5 + $0x74] sm:$0xf]
    %v562 = vld [vmem:[#allocation5 + $0x78] sm:$0xf]
    %v563 = vld [vmem:[#allocation5 + $0x7c] sm:$0xf]
    %v564 = vlaneseq
    %v565 = vshrl.u32 %v564, 7
    %v566 = vsub.s32 0, %v565
    %v567 = vrot.slane %v56, %v566
    %v600 = vunpack.c.l.b16 %v532
    %v601 = vunpack.c.l.b16 %v533
    %v602 = vunpack.c.l.b16 %v534
    %v603 = vunpack.c.l.b16 %v535
    %v604 = vunpack.c.l.b16 %v536
    %v605 = vunpack.c.l.b16 %v537
    %v606 = vunpack.c.l.b16 %v538
    %v607 = vunpack.c.l.b16 %v539
    %v608 = vunpack.c.l.b16 %v540
    %v609 = vunpack.c.l.b16 %v541
    %v610 = vunpack.c.l.b16 %v542
    %v611 = vunpack.c.l.b16 %v543
    %v612 = vunpack.c.l.b16 %v544
    %v613 = vunpack.c.l.b16 %v545
    %v614 = vunpack.c.l.b16 %v546
    %v615 = vunpack.c.l.b16 %v547
    %v616 = vunpack.c.l.b16 %v548
    %v617 = vunpack.c.l.b16 %v549
    %v618 = vunpack.c.l.b16 %v550
    %v619 = vunpack.c.l.b16 %v551
    %v620 = vunpack.c.l.b16 %v552
    %v621 = vunpack.c.l.b16 %v553
    %v622 = vunpack.c.l.b16 %v554
    %v623 = vunpack.c.l.b16 %v555
    %v624 = vunpack.c.l.b16 %v556
    %v625 = vunpack.c.l.b16 %v557
    %v626 = vunpack.c.l.b16 %v558
    %v627 = vunpack.c.l.b16 %v559
    %v628 = vunpack.c.l.b16 %v560
    %v629 = vunpack.c.l.b16 %v561
    %v630 = vunpack.c.l.b16 %v562
    %v631 = vunpack.c.l.b16 %v563
    %v632 = vpack.c.b16 %v601, %v600
    %v633 = vpack.c.b16 %v603, %v602
    %v634 = vpack.c.b16 %v605, %v604
    %v635 = vpack.c.b16 %v607, %v606
    %v636 = vpack.c.b16 %v609, %v608
    %v637 = vpack.c.b16 %v611, %v610
    %v638 = vpack.c.b16 %v613, %v612
    %v639 = vpack.c.b16 %v615, %v614
    %v640 = vpack.c.b16 %v617, %v616
    %v641 = vpack.c.b16 %v619, %v618
    %v642 = vpack.c.b16 %v621, %v620
    %v643 = vpack.c.b16 %v623, %v622
    %v644 = vpack.c.b16 %v625, %v624
    %v645 = vpack.c.b16 %v627, %v626
    %v646 = vpack.c.b16 %v629, %v628
    %v647 = vpack.c.b16 %v631, %v630
    %664 = vmatprep.subr.bf16.mxu0 0
    %665 = vmatpush1.bf16.msra.mxu0 %v632
    %666 = vmatprep.subr.bf16.mxu0 0
    %667 = vmatpush1.bf16.msra.mxu0 %v633
    %668 = vmatprep.subr.bf16.mxu0 0
    %669 = vmatpush1.bf16.msra.mxu0 %v634
    %670 = vmatprep.subr.bf16.mxu0 0
    %671 = vmatpush1.bf16.msra.mxu0 %v635
    %672 = vmatprep.subr.bf16.mxu0 0
    %673 = vmatpush1.bf16.msra.mxu0 %v636
    %674 = vmatprep.subr.bf16.mxu0 0
    %675 = vmatpush1.bf16.msra.mxu0 %v637
    %676 = vmatprep.subr.bf16.mxu0 0
    %677 = vmatpush1.bf16.msra.mxu0 %v638
    %678 = vmatprep.subr.bf16.mxu0 0
    %679 = vmatpush1.bf16.msra.mxu0 %v639
    %680 = vmatprep.subr.bf16.mxu0 0
    %681 = vmatpush1.bf16.msra.mxu0 %v640
    %682 = vmatprep.subr.bf16.mxu0 0
    %683 = vmatpush1.bf16.msra.mxu0 %v641
    %684 = vmatprep.subr.bf16.mxu0 0
    %685 = vmatpush1.bf16.msra.mxu0 %v642
    %686 = vmatprep.subr.bf16.mxu0 0
    %687 = vmatpush1.bf16.msra.mxu0 %v643
    %688 = vmatprep.subr.bf16.mxu0 0
    %689 = vmatpush1.bf16.msra.mxu0 %v644
    %690 = vmatprep.subr.bf16.mxu0 0
    %691 = vmatpush1.bf16.msra.mxu0 %v645
    %692 = vmatprep.subr.bf16.mxu0 0
    %693 = vmatpush1.bf16.msra.mxu0 %v646
    %694 = vmatprep.subr.bf16.mxu0 0
    %695 = vmatpush1.bf16.msra.mxu0 %v647
    %696 = vmatprep.mubr.bf16.mxu0 %v525
    %697 = vmatmul.mubr.bf16.gmra.mrb[0].mxu0 %v524
    %v698 = vpop.f32.mrb[0].mxu0
    %v699 = vadd.f32 %v567, %v698
    %v700 = vpop.f32.mrb[0].mxu0
    %v701 = vpop.f32.mrb[0].mxu0
    %v702 = vadd.f32 %v567, %v701
    %v703 = vpop.f32.mrb[0].mxu0
    %704 = vmatprep.mubr.bf16.mxu0 %v527
    %705 = vmatmul.mubr.bf16.gmra.mrb[0].mxu0 %v526
    %v706 = vpop.f32.mrb[0].mxu0
    %v707 = vadd.f32 %v567, %v706
    %v708 = vpop.f32.mrb[0].mxu0
    %v709 = vpop.f32.mrb[0].mxu0
    %v710 = vadd.f32 %v567, %v709
    %v711 = vpop.f32.mrb[0].mxu0
    %712 = vmatprep.mubr.bf16.mxu0 %v529
    %713 = vmatmul.mubr.bf16.gmra.mrb[0].mxu0 %v528
    %v714 = vpop.f32.mrb[0].mxu0
    %v715 = vadd.f32 %v567, %v714
    %v716 = vpop.f32.mrb[0].mxu0
    %v717 = vpop.f32.mrb[0].mxu0
    %v718 = vadd.f32 %v567, %v717
    %v719 = vpop.f32.mrb[0].mxu0
    %720 = vmatprep.mubr.bf16.mxu0 %v531
    %721 = vmatmul.mubr.bf16.gmra.mrb[0].mxu0 %v530
    %v722 = vpop.f32.mrb[0].mxu0
    %v723 = vadd.f32 %v567, %v722
    %v724 = vpop.f32.mrb[0].mxu0
    %v725 = vpop.f32.mrb[0].mxu0
    %v726 = vadd.f32 %v567, %v725
    %v727 = vpop.f32.mrb[0].mxu0
    %728 = vdwg.mxu0
    %v729 = vtanh.pop %v699
    %v730 = vtanh.pop %v702
    %v731 = vtanh.pop %v707
    %v732 = vtanh.pop %v710
    %v733 = vtanh.pop %v715
    %v734 = vtanh.pop %v718
    %v735 = vtanh.pop %v723
    %v736 = vtanh.pop %v726
    %v737 = vlaneseq
    %v738 = vshrl.u32 %v737, 7
    %v739 = vsub.s32 1, %v738
    %v740 = vrot.slane %v56, %v739
    %v741 = vmul.f32 %v729, %v740
    %v742 = vmul.f32 %v730, %v740
    %v743 = vmul.f32 %v731, %v740
    %v744 = vmul.f32 %v732, %v740
    %v745 = vmul.f32 %v733, %v740
    %v746 = vmul.f32 %v734, %v740
    %v747 = vmul.f32 %v735, %v740
    %v748 = vmul.f32 %v736, %v740
    %v749 = vlaneseq
    %v750 = vshrl.u32 %v749, 7
    %v751 = vsub.s32 2, %v750
    %v752 = vrot.slane %v56, %v751
    %v753 = vadd.f32 %v741, %v752
    %v754 = vadd.f32 %v742, %v752
    %v755 = vadd.f32 %v743, %v752
    %v756 = vadd.f32 %v744, %v752
    %v757 = vadd.f32 %v745, %v752
    %v758 = vadd.f32 %v746, %v752
    %v759 = vadd.f32 %v747, %v752
    %v760 = vadd.f32 %v748, %v752
    %761 = vst [vmem:[#allocation7] sm:$0xff] %v753
    %762 = vst [vmem:[#allocation7 + $0x8] sm:$0xff] %v754
    %763 = vst [vmem:[#allocation7 + $0x10] sm:$0xff] %v755
    %764 = vst [vmem:[#allocation7 + $0x18] sm:$0xff] %v756
    %765 = vst [vmem:[#allocation7 + $0x20] sm:$0xff] %v757
    %766 = vst [vmem:[#allocation7 + $0x28] sm:$0xff] %v758
    %767 = vst [vmem:[#allocation7 + $0x30] sm:$0xff] %v759
    %768 = vst [vmem:[#allocation7 + $0x38] sm:$0xff] %v760
    // Predicated region
    $region38: #{tpu_custom_call.1} parent=1 // pred_check
      _
    $region39: #{tpu_custom_call.1} parent=1 // pred_check_branch
      %770 = sbr.rel (0) target = $region41
    $region40: #{tpu_custom_call.1} parent=1 // pred_region
      %s772 = ssub.s32 1024, 1024
      %773 = vsyncadd [#allocation4], %s772
      %s774 = sshll.u32 [#allocation7], 4
      %s775 = int_to_ptr.vmem [resolvable:$true] %s774
      %780 = dma.vmem_to_hbm [thread:$0]  %s775, 1024, %s7, [#allocation4], 128, 128, 8
    $region41: #{tpu_custom_call.1} parent=1 // pred_fallthru
      _
    // Predicated region
    $region42: #{tpu_custom_call.1} parent=1 // pred_check
      _
    $region43: #{tpu_custom_call.1} parent=1 // pred_check_branch
      %782 = sbr.rel (0) target = $region45
    $region44: #{tpu_custom_call.1} parent=1 // pred_region
      %783 = dma.done [#allocation4], 1024
    $region45: #{tpu_custom_call.1} parent=1 // pred_fallthru
      _
    %784 = vsyncpa [#allocation3], 1
    %785 = vsyncpa [#allocation6], 1
    %786 = vsyncpa [#allocation4], 1

</llo_original>
